<compile_context>
chip_gen: v6e
topology: v6e:2x2x1
jax: 0.10.0
libtpu: 0.0.40
codegen_flags: <defaults>
</compile_context>

<pallas_src>
import functools

import jax
import jax.numpy as jnp
from jax.experimental import pallas as pl
from jax.experimental.pallas import tpu as pltpu


HIDDEN = 64
SUBLANE = 8


def _round_up(n, m):
    return ((n + m - 1) // m) * m


def _orthogonal(key, rows, cols, gain=1.0, dtype=jnp.float32):
    """Deterministic orthogonal init (same recipe as torch.nn.init.orthogonal_)."""
    n, m = max(rows, cols), min(rows, cols)
    a = jax.random.normal(key, (n, m), dtype=jnp.float32)
    q, r = jnp.linalg.qr(a)
    d = jnp.sign(jnp.diagonal(r))
    q = q * d[None, :]
    if rows < cols:
        q = q.T
    return (gain * q[:rows, :cols]).astype(dtype)


def init_actor_params(key, state_dim, action_dim, dtype=jnp.float32):
    """Unpadded weights in [in, out] layout + zero biases (gain=1.0, matching module)."""
    k1, k2, k3 = jax.random.split(key, 3)
    w1 = _orthogonal(k1, HIDDEN, state_dim, dtype=dtype).T      # [state_dim, 64]
    w2 = _orthogonal(k2, HIDDEN, HIDDEN, dtype=dtype).T         # [64, 64]
    w3 = _orthogonal(k3, action_dim, HIDDEN, dtype=dtype).T     # [64, action_dim]
    b1 = jnp.zeros((1, HIDDEN), dtype=dtype)
    b2 = jnp.zeros((1, HIDDEN), dtype=dtype)
    b3 = jnp.zeros((1, action_dim), dtype=dtype)
    return (w1, b1, w2, b2, w3, b3)


def pack_actor_params(params, weight_dtype=jnp.float32):
    """Cast weights (bf16 fine on all generations' MXU) and pack biases into one slab.

    Biases stay f32 (added to the f32 accumulator). No lane padding: the kernel's
    weight blocks span the full arrays, which satisfies the TPU block-shape rules.
    """
    w1, b1, w2, b2, w3, b3 = params
    action_dim = w3.shape[1]
    bw = max(HIDDEN, action_dim)

    w1c = w1.astype(weight_dtype)
    w2c = w2.astype(weight_dtype)
    w3c = w3.astype(weight_dtype)

    # One bias slab (8 sublanes x bw lanes); rows 0/1/2 hold b1/b2/b3.
    bias = jnp.zeros((SUBLANE, bw), jnp.float32)
    bias = bias.at[0, :HIDDEN].set(b1[0].astype(jnp.float32))
    bias = bias.at[1, :HIDDEN].set(b2[0].astype(jnp.float32))
    bias = bias.at[2, :action_dim].set(b3[0].astype(jnp.float32))
    return (w1c, w2c, w3c, bias)


def _make_actor_kernel(hidden, action_dim):
    def kernel(x_ref, w1_ref, w2_ref, w3_ref, b_ref, o_ref):
        wdt = w1_ref.dtype                   # f32 or bf16 operand dtype
        x = x_ref[...]                       # (tb, state_dim) f32
        b = b_ref[...]                       # (8, bw) f32

        # Layer 1: Linear (MXU, f32 accumulate) + Tanh (EUP; bf16 path if wdt=bf16)
        a1 = jnp.dot(x.astype(wdt), w1_ref[...],
                     preferred_element_type=jnp.float32) + b[0:1, :hidden]
        h1 = jnp.tanh(a1.astype(wdt))
        # Layer 2
        a2 = jnp.dot(h1, w2_ref[...],
                     preferred_element_type=jnp.float32) + b[1:2, :hidden]
        h2 = jnp.tanh(a2.astype(wdt))
        # Layer 3: logits, stored unpadded (tb, action_dim)
        logits = jnp.dot(h2, w3_ref[...],
                         preferred_element_type=jnp.float32) + b[2:3, :action_dim]
        o_ref[...] = logits.astype(o_ref.dtype)
    return kernel


@functools.partial(jax.jit, static_argnames=("batch_tile",))
def actor_forward(x, packed_params, *, batch_tile=2048):
    """Forward pass of ActorNetwork.  x: [B, state_dim] f32 -> [B, action_dim]."""
    w1, w2, w3, bias = packed_params
    batch, state_dim = x.shape
    hidden = w1.shape[1]
    action_dim = w3.shape[1]
    bw = bias.shape[1]

    # Large batch tiles amortize per-grid-step overhead; keep >=2 grid steps when
    # batch allows so both v7x TensorCores get work ("parallel" grid axis).
    tb = max(SUBLANE,
             min(batch_tile, _round_up(pl.cdiv(batch, 2), SUBLANE)))
    grid = (pl.cdiv(batch, tb),)             # edge block is clipped, not padded

    kernel = _make_actor_kernel(hidden, action_dim)

    itemsize = jnp.dtype(x.dtype).itemsize
    wbytes = sum(int(w.size) * jnp.dtype(w.dtype).itemsize for w in (w1, w2, w3))
    cost = pl.CostEstimate(
        flops=2 * batch * (state_dim * hidden + hidden * hidden + hidden * action_dim),
        transcendentals=2 * batch * hidden,
        bytes_accessed=int(x.size) * itemsize
        + batch * action_dim * itemsize
        + wbytes + int(bias.size) * 4,
    )

    out = pl.pallas_call(
        kernel,
        out_shape=jax.ShapeDtypeStruct((batch, action_dim), x.dtype),
        grid=grid,
        in_specs=[
            pl.BlockSpec((tb, state_dim), lambda i: (i, 0)),       # x tile, pipelined
            pl.BlockSpec((state_dim, hidden), lambda i: (0, 0)),   # weights: VMEM-resident
            pl.BlockSpec((hidden, hidden), lambda i: (0, 0)),
            pl.BlockSpec((hidden, action_dim), lambda i: (0, 0)),
            pl.BlockSpec((SUBLANE, bw), lambda i: (0, 0)),         # packed bias slab
        ],
        out_specs=pl.BlockSpec((tb, action_dim), lambda i: (i, 0)),
        compiler_params=pltpu.CompilerParams(
            dimension_semantics=("parallel",),
        ),
        cost_estimate=cost,
    )(x, w1, w2, w3, bias)

    return out


def actor_forward_ref(x, params):
    """Pure-JAX reference for correctness checking (unpadded params)."""
    w1, b1, w2, b2, w3, b3 = params
    h1 = jnp.tanh(x @ w1 + b1)
    h2 = jnp.tanh(h1 @ w2 + b2)
    return h2 @ w3 + b3


if __name__ == "__main__":
    key = jax.random.PRNGKey(0)
    k_x, k_p, k_x2 = jax.random.split(key, 3)

    batch, state_dim, action_dim = 8, 32, 8
    x = jax.random.normal(k_x, (batch, state_dim), dtype=jnp.float32)
    params = init_actor_params(k_p, state_dim, action_dim)

    # f32 weights for a tight parity check; weight_dtype=jnp.bfloat16 is the
    # recommended production setting on v6e/v7x (bf16 MXU + bf16 tanh on the EUP).
    packed = pack_actor_params(params, weight_dtype=jnp.float32)

    out = actor_forward(x, packed)
    out = jax.block_until_ready(out)
    ref = actor_forward_ref(x, params)
    assert out.shape == (batch, action_dim)
    assert jnp.allclose(out, ref, atol=1e-5, rtol=1e-5), "mismatch vs reference"

    # Ragged batch (not a multiple of the tile) exercises the clipped edge block.
    batch2 = 30
    x2 = jax.random.normal(k_x2, (batch2, state_dim), dtype=jnp.float32)
    out2 = jax.block_until_ready(actor_forward(x2, packed))
    ref2 = actor_forward_ref(x2, params)
    assert out2.shape == (batch2, action_dim)
    assert jnp.allclose(out2, ref2, atol=1e-5, rtol=1e-5), "mismatch (ragged batch)"

    print("KERNEL_OK")
</pallas_src>

<mosaic_0001>
module attributes {stable_mosaic.version = 11 : i64} {
  func.func @kernel(%arg0: i32, %arg1: memref<8x32xf32, #tpu.memory_space<vmem>>, %arg2: memref<32x64xf32, #tpu.memory_space<vmem>>, %arg3: memref<64x64xf32, #tpu.memory_space<vmem>>, %arg4: memref<64x8xf32, #tpu.memory_space<vmem>>, %arg5: memref<8x64xf32, #tpu.memory_space<vmem>>, %arg6: memref<8x8xf32, #tpu.memory_space<vmem>>) attributes {dimension_semantics = [#tpu.dimension_semantics<parallel>], iteration_bounds = array<i64: 1>, scalar_prefetch = 0 : i64, scratch_operands = 0 : i64, tpu.core_type = #tpu.core_type<tc>, window_params = [{transform_indices = @transform_0, window_bounds = array<i64: 8, 32>}, {pipeline_mode = #tpu.pipeline_mode<synchronous>, transform_indices = @transform_1, window_bounds = array<i64: 32, 64>}, {pipeline_mode = #tpu.pipeline_mode<synchronous>, transform_indices = @transform_2, window_bounds = array<i64: 64, 64>}, {pipeline_mode = #tpu.pipeline_mode<synchronous>, transform_indices = @transform_3, window_bounds = array<i64: 64, 8>}, {pipeline_mode = #tpu.pipeline_mode<synchronous>, transform_indices = @transform_4, window_bounds = array<i64: 8, 64>}, {transform_indices = @transform_5, window_bounds = array<i64: 8, 8>}]} {
    %c0 = arith.constant 0 : index
    %c0_0 = arith.constant 0 : index
    %0 = vector.load %arg1[%c0, %c0_0] : memref<8x32xf32, #tpu.memory_space<vmem>>, vector<8x32xf32>
    %c0_1 = arith.constant 0 : index
    %c0_2 = arith.constant 0 : index
    %1 = vector.load %arg5[%c0_1, %c0_2] : memref<8x64xf32, #tpu.memory_space<vmem>>, vector<8x64xf32>
    %c0_3 = arith.constant 0 : index
    %c0_4 = arith.constant 0 : index
    %2 = vector.load %arg2[%c0_3, %c0_4] : memref<32x64xf32, #tpu.memory_space<vmem>>, vector<32x64xf32>
    %cst = arith.constant dense<0.000000e+00> : vector<8x64xf32>
    %3 = tpu.matmul %0, %2, %cst {dimension_numbers = #tpu.dot_dimension_numbers<[1], [0], [0], [1], [0, 0, 1, 1], [], []>} : vector<8x32xf32>, vector<32x64xf32>, vector<8x64xf32> -> vector<8x64xf32>
    %4 = vector.extract_strided_slice %1 {offsets = [0, 0], sizes = [1, 64], strides = [1, 1]} : vector<8x64xf32> to vector<1x64xf32>
    %5 = vector.broadcast %4 : vector<1x64xf32> to vector<8x64xf32>
    %6 = arith.addf %3, %5 : vector<8x64xf32>
    %7 = math.tanh %6 : vector<8x64xf32>
    %c0_5 = arith.constant 0 : index
    %c0_6 = arith.constant 0 : index
    %8 = vector.load %arg3[%c0_5, %c0_6] : memref<64x64xf32, #tpu.memory_space<vmem>>, vector<64x64xf32>
    %cst_7 = arith.constant dense<0.000000e+00> : vector<8x64xf32>
    %9 = tpu.matmul %7, %8, %cst_7 {dimension_numbers = #tpu.dot_dimension_numbers<[1], [0], [0], [1], [0, 0, 1, 1], [], []>} : vector<8x64xf32>, vector<64x64xf32>, vector<8x64xf32> -> vector<8x64xf32>
    %10 = vector.extract_strided_slice %1 {offsets = [1, 0], sizes = [1, 64], strides = [1, 1]} : vector<8x64xf32> to vector<1x64xf32>
    %11 = vector.broadcast %10 : vector<1x64xf32> to vector<8x64xf32>
    %12 = arith.addf %9, %11 : vector<8x64xf32>
    %13 = math.tanh %12 : vector<8x64xf32>
    %c0_8 = arith.constant 0 : index
    %c0_9 = arith.constant 0 : index
    %14 = vector.load %arg4[%c0_8, %c0_9] : memref<64x8xf32, #tpu.memory_space<vmem>>, vector<64x8xf32>
    %cst_10 = arith.constant dense<0.000000e+00> : vector<8x8xf32>
    %15 = tpu.matmul %13, %14, %cst_10 {dimension_numbers = #tpu.dot_dimension_numbers<[1], [0], [0], [1], [0, 0, 1, 1], [], []>} : vector<8x64xf32>, vector<64x8xf32>, vector<8x8xf32> -> vector<8x8xf32>
    %16 = vector.extract_strided_slice %1 {offsets = [2, 0], sizes = [1, 8], strides = [1, 1]} : vector<8x64xf32> to vector<1x8xf32>
    %17 = vector.broadcast %16 : vector<1x8xf32> to vector<8x8xf32>
    %18 = arith.addf %15, %17 : vector<8x8xf32>
    %c0_11 = arith.constant 0 : index
    %c0_12 = arith.constant 0 : index
    %19 = vector.load %arg6[%c0_11, %c0_12] : memref<8x8xf32, #tpu.memory_space<vmem>>, vector<8x8xf32>
    tpu.vector_store %arg6[%c0_11, %c0_12], %18 {strides = array<i32>} : memref<8x8xf32, #tpu.memory_space<vmem>>, vector<8x8xf32>,
    return
  }
  func.func @transform_0(%arg0: i32) -> (i32, i32) {
    %c0_i32 = arith.constant 0 : i32
    %c0_i32_0 = arith.constant 0 : i32
    return %arg0, %c0_i32 : i32, i32
  }
  func.func @transform_1(%arg0: i32) -> (i32, i32) {
    %c0_i32 = arith.constant 0 : i32
    %c0_i32_0 = arith.constant 0 : i32
    %c0_i32_1 = arith.constant 0 : i32
    return %c0_i32, %c0_i32_0 : i32, i32
  }
  func.func @transform_2(%arg0: i32) -> (i32, i32) {
    %c0_i32 = arith.constant 0 : i32
    %c0_i32_0 = arith.constant 0 : i32
    %c0_i32_1 = arith.constant 0 : i32
    return %c0_i32, %c0_i32_0 : i32, i32
  }
  func.func @transform_3(%arg0: i32) -> (i32, i32) {
    %c0_i32 = arith.constant 0 : i32
    %c0_i32_0 = arith.constant 0 : i32
    %c0_i32_1 = arith.constant 0 : i32
    return %c0_i32, %c0_i32_0 : i32, i32
  }
  func.func @transform_4(%arg0: i32) -> (i32, i32) {
    %c0_i32 = arith.constant 0 : i32
    %c0_i32_0 = arith.constant 0 : i32
    %c0_i32_1 = arith.constant 0 : i32
    return %c0_i32, %c0_i32_0 : i32, i32
  }
  func.func @transform_5(%arg0: i32) -> (i32, i32) {
    %c0_i32 = arith.constant 0 : i32
    %c0_i32_0 = arith.constant 0 : i32
    return %arg0, %c0_i32 : i32, i32
  }
}

</mosaic_0001>

<llo_original>
// kernel: actor_forward.1
$region0: #{actor_forward.1}
  #allocation0 [shape = 'u32[]', space=smem, size = 0x4, offset = 0x4, fixed_abs, tag = 'smem constant byte address 0x4 - core index']
  #allocation1 [shape = 'u32[144,128]{1,0:T(1,128)}', space=vmem, size = 0x12000, scoped, tag = 'internal scratch']
  %s0 = inlined_call_operand.vmem [shape: f32[8,32], index: 0, kind: input, shape index: {}]
  %s1 = inlined_call_operand.hbm [shape: f32[32,64], index: 1, kind: input, shape index: {}]
  %s2 = inlined_call_operand.vmem [shape: f32[64,64], index: 2, kind: input, shape index: {}]
  %s3 = inlined_call_operand.vmem [shape: f32[64,8], index: 3, kind: input, shape index: {}]
  %s4 = inlined_call_operand.hbm [shape: f32[8,64], index: 4, kind: input, shape index: {}]
  %s5 = inlined_call_operand.hbm [shape: f32[8,8], index: 5, kind: output, shape index: {}]
  %s6 = sld [smem:[#allocation0]]
  $region38: #{actor_forward.1} parent=0
    _
  %s8 = ssub.s32 1, %s6
  %s9 = scalar_select 0, %s8, %s6
  $region1: #{actor_forward.1} parent=0
    #allocation2 [shape = 'u8[16384]{0}', space=vmem, size = 0x4000, scoped, tag = 'input window, operand 1, single buffered']
    #allocation3 [shape = 's32[1]{0}', space=sflag, size = 0x4, scoped, tag = 'scoped memory for actor_forward.1']
    #allocation4 [shape = 's32[1]{0}', space=sflag, size = 0x4, scoped, tag = 'scoped memory for actor_forward.1']
    #allocation5 [shape = 'u8[4096]{0}', space=vmem, size = 0x1000, scoped, tag = 'input window, operand 4, single buffered']
    #allocation6 [shape = 's32[1]{0}', space=sflag, size = 0x4, scoped, tag = 'scoped memory for actor_forward.1']
    #allocation7 [shape = 'u8[4096]{0}', space=vmem, size = 0x1000, scoped, tag = 'output window, operand 0, single buffered']
    %10 = vsyncpa [#allocation3], 0
    %11 = vsyncpa [#allocation6], 0
    %12 = vsyncpa [#allocation4], 0
    // Predicated region
    $region2: #{actor_forward.1} parent=1 // pred_check
      _
    $region3: #{actor_forward.1} parent=1 // pred_check_branch
      %14 = sbr.rel (0) target = $region5
    $region4: #{actor_forward.1} parent=1 // pred_region
      _
    $region5: #{actor_forward.1} parent=1 // pred_fallthru
      _
    // Predicated region
    $region6: #{actor_forward.1} parent=1 // pred_check
      _
    $region7: #{actor_forward.1} parent=1 // pred_check_branch
      %16 = sbr.rel (0) target = $region9
    $region8: #{actor_forward.1} parent=1 // pred_region
      %s18 = ssub.s32 512, 512
      %19 = vsyncadd [#allocation3], %s18
      %s20 = sshll.u32 [#allocation2], 4
      %s21 = int_to_ptr.vmem [resolvable:$true] %s20
      %26 = dma.hbm_to_vmem [thread:$0]  %s1, 512, %s21, [#allocation3], 128, 128, 8
    $region9: #{actor_forward.1} parent=1 // pred_fallthru
      _
    // Predicated region
    $region10: #{actor_forward.1} parent=1 // pred_check
      _
    $region11: #{actor_forward.1} parent=1 // pred_check_branch
      %28 = sbr.rel (0) target = $region13
    $region12: #{actor_forward.1} parent=1 // pred_region
      _
    $region13: #{actor_forward.1} parent=1 // pred_fallthru
      _
    // Predicated region
    $region14: #{actor_forward.1} parent=1 // pred_check
      _
    $region15: #{actor_forward.1} parent=1 // pred_check_branch
      %30 = sbr.rel (0) target = $region17
    $region16: #{actor_forward.1} parent=1 // pred_region
      _
    $region17: #{actor_forward.1} parent=1 // pred_fallthru
      _
    // Predicated region
    $region18: #{actor_forward.1} parent=1 // pred_check
      _
    $region19: #{actor_forward.1} parent=1 // pred_check_branch
      %32 = sbr.rel (0) target = $region21
    $region20: #{actor_forward.1} parent=1 // pred_region
      %s34 = ssub.s32 128, 128
      %35 = vsyncadd [#allocation6], %s34
      %s37 = sshll.u32 [#allocation5], 4
      %s38 = int_to_ptr.vmem [resolvable:$true] %s37
      %40 = dma.hbm_to_vmem [thread:$0]  %s4, 128, %s38, [#allocation6]
    $region21: #{actor_forward.1} parent=1 // pred_fallthru
      _
    // Predicated region
    $region22: #{actor_forward.1} parent=1 // pred_check
      _
    $region23: #{actor_forward.1} parent=1 // pred_check_branch
      %42 = sbr.rel (0) target = $region25
    $region24: #{actor_forward.1} parent=1 // pred_region
      %43 = dma.done [#allocation3], 512
    $region25: #{actor_forward.1} parent=1 // pred_fallthru
      _
    // Predicated region
    $region26: #{actor_forward.1} parent=1 // pred_check
      _
    $region27: #{actor_forward.1} parent=1 // pred_check_branch
      %45 = sbr.rel (0) target = $region29
    $region28: #{actor_forward.1} parent=1 // pred_region
      %46 = dma.done [#allocation6], 128
    $region29: #{actor_forward.1} parent=1 // pred_fallthru
      _
    %v47 = vld [vmem:[%s0] sm:$0xff]
    %v48 = vld [vmem:[#allocation5] sm:$0xff]
    %v49 = vld [vmem:[#allocation2] sm:$0xff]
    %v50 = vld [vmem:[#allocation2 + $0x8] sm:$0xff]
    %v51 = vld [vmem:[#allocation2 + $0x10] sm:$0xff]
    %v52 = vld [vmem:[#allocation2 + $0x18] sm:$0xff]
    %v53 = vlaneseq
    %v54 = vshrl.u32 %v53, 7
    %v55 = vsub.s32 0, %v54
    %v56 = vrot.slane %v48, %v55
    %vm57 = vcmask 261120
    %v59 = vsel %vm57, %v47, 0
    %61 = vmatprep.subr.mxu0 0.0
    %62 = vmatpush1.msra.mxu0 0.0
    %63 = vmatprep.subr.mxu0 0.0
    %64 = vmatpush1.msra.mxu0 0.0
    %65 = vmatprep.subr.mxu0 0.0
    %66 = vmatpush1.msra.mxu0 0.0
    %67 = vmatprep.subr.mxu0 0.0
    %68 = vmatpush1.msra.mxu0 0.0
    %69 = vmatprep.subr.mxu0 0.0
    %70 = vmatpush1.msra.mxu0 0.0
    %71 = vmatprep.subr.mxu0 0.0
    %72 = vmatpush1.msra.mxu0 0.0
    %73 = vmatprep.subr.mxu0 0.0
    %74 = vmatpush1.msra.mxu0 0.0
    %75 = vmatprep.subr.mxu0 0.0
    %76 = vmatpush1.msra.mxu0 0.0
    %77 = vmatprep.subr.mxu0 0.0
    %78 = vmatpush1.msra.mxu0 0.0
    %79 = vmatprep.subr.mxu0 0.0
    %80 = vmatpush1.msra.mxu0 0.0
    %81 = vmatprep.subr.mxu0 0.0
    %82 = vmatpush1.msra.mxu0 0.0
    %83 = vmatprep.subr.mxu0 0.0
    %84 = vmatpush1.msra.mxu0 0.0
    %85 = vmatprep.subr.mxu0 0.0
    %86 = vmatpush1.msra.mxu0 %v52
    %87 = vmatprep.subr.mxu0 0.0
    %88 = vmatpush1.msra.mxu0 %v51
    %89 = vmatprep.subr.mxu0 0.0
    %90 = vmatpush1.msra.mxu0 %v50
    %91 = vmatprep.subr.mxu0 0.0
    %92 = vmatpush1.msra.mxu0 %v49
    %93 = vmatprep.subr.mxu0 0.0
    %94 = vmatpush2.msra.mxu0 0.0
    %95 = vmatprep.subr.mxu0 0.0
    %96 = vmatpush2.msra.mxu0 0.0
    %97 = vmatprep.subr.mxu0 0.0
    %98 = vmatpush2.msra.mxu0 0.0
    %99 = vmatprep.subr.mxu0 0.0
    %100 = vmatpush2.msra.mxu0 0.0
    %101 = vmatprep.subr.mxu0 0.0
    %102 = vmatpush2.msra.mxu0 0.0
    %103 = vmatprep.subr.mxu0 0.0
    %104 = vmatpush2.msra.mxu0 0.0
    %105 = vmatprep.subr.mxu0 0.0
    %106 = vmatpush2.msra.mxu0 0.0
    %107 = vmatprep.subr.mxu0 0.0
    %108 = vmatpush2.msra.mxu0 0.0
    %109 = vmatprep.subr.mxu0 0.0
    %110 = vmatpush2.msra.mxu0 0.0
    %111 = vmatprep.subr.mxu0 0.0
    %112 = vmatpush2.msra.mxu0 0.0
    %113 = vmatprep.subr.mxu0 0.0
    %114 = vmatpush2.msra.mxu0 0.0
    %115 = vmatprep.subr.mxu0 0.0
    %116 = vmatpush2.msra.mxu0 0.0
    %117 = vmatprep.subr.mxu0 0.0
    %118 = vmatpush2.msra.mxu0 0.0
    %119 = vmatprep.subr.mxu0 0.0
    %120 = vmatpush2.msra.mxu0 0.0
    %121 = vmatprep.subr.mxu0 0.0
    %122 = vmatpush2.msra.mxu0 0.0
    %123 = vmatprep.subr.mxu0 0.0
    %124 = vmatpush2.msra.mxu0 0.0
    %125 = vmatprep.mubr.f32.mxu0 0.0
    %126 = vmatmul.mubr.f32.gmra.mxu0 %v59
    %v127 = vpop.f32.mrf.mxu0
    %v128 = vadd.f32 %v56, %v127
    %v129 = vpop.f32.mrf.mxu0
    %130 = vdwg.mxu0
    %v131 = vtanh.pop %v128
    %v132 = vld [vmem:[%s2] sm:$0xff]
    %v133 = vld [vmem:[%s2 + $0x8] sm:$0xff]
    %v134 = vld [vmem:[%s2 + $0x10] sm:$0xff]
    %v135 = vld [vmem:[%s2 + $0x18] sm:$0xff]
    %v136 = vld [vmem:[%s2 + $0x20] sm:$0xff]
    %v137 = vld [vmem:[%s2 + $0x28] sm:$0xff]
    %v138 = vld [vmem:[%s2 + $0x30] sm:$0xff]
    %v139 = vld [vmem:[%s2 + $0x38] sm:$0xff]
    %v140 = vlaneseq
    %v141 = vshrl.u32 %v140, 7
    %v142 = vsub.s32 1, %v141
    %v143 = vrot.slane %v48, %v142
    %vm144 = vcmask 523264
    %v146 = vsel %vm144, %v131, 0
    %148 = vmatprep.subr.mxu0 0.0
    %149 = vmatpush1.msra.mxu0 0.0
    %150 = vmatprep.subr.mxu0 0.0
    %151 = vmatpush1.msra.mxu0 0.0
    %152 = vmatprep.subr.mxu0 0.0
    %153 = vmatpush1.msra.mxu0 0.0
    %154 = vmatprep.subr.mxu0 0.0
    %155 = vmatpush1.msra.mxu0 0.0
    %156 = vmatprep.subr.mxu0 0.0
    %157 = vmatpush1.msra.mxu0 0.0
    %158 = vmatprep.subr.mxu0 0.0
    %159 = vmatpush1.msra.mxu0 0.0
    %160 = vmatprep.subr.mxu0 0.0
    %161 = vmatpush1.msra.mxu0 0.0
    %162 = vmatprep.subr.mxu0 0.0
    %163 = vmatpush1.msra.mxu0 0.0
    %164 = vmatprep.subr.mxu0 0.0
    %165 = vmatpush1.msra.mxu0 %v139
    %166 = vmatprep.subr.mxu0 0.0
    %167 = vmatpush1.msra.mxu0 %v138
    %168 = vmatprep.subr.mxu0 0.0
    %169 = vmatpush1.msra.mxu0 %v137
    %170 = vmatprep.subr.mxu0 0.0
    %171 = vmatpush1.msra.mxu0 %v136
    %172 = vmatprep.subr.mxu0 0.0
    %173 = vmatpush1.msra.mxu0 %v135
    %174 = vmatprep.subr.mxu0 0.0
    %175 = vmatpush1.msra.mxu0 %v134
    %176 = vmatprep.subr.mxu0 0.0
    %177 = vmatpush1.msra.mxu0 %v133
    %178 = vmatprep.subr.mxu0 0.0
    %179 = vmatpush1.msra.mxu0 %v132
    %180 = vmatprep.subr.mxu0 0.0
    %181 = vmatpush2.msra.mxu0 0.0
    %182 = vmatprep.subr.mxu0 0.0
    %183 = vmatpush2.msra.mxu0 0.0
    %184 = vmatprep.subr.mxu0 0.0
    %185 = vmatpush2.msra.mxu0 0.0
    %186 = vmatprep.subr.mxu0 0.0
    %187 = vmatpush2.msra.mxu0 0.0
    %188 = vmatprep.subr.mxu0 0.0
    %189 = vmatpush2.msra.mxu0 0.0
    %190 = vmatprep.subr.mxu0 0.0
    %191 = vmatpush2.msra.mxu0 0.0
    %192 = vmatprep.subr.mxu0 0.0
    %193 = vmatpush2.msra.mxu0 0.0
    %194 = vmatprep.subr.mxu0 0.0
    %195 = vmatpush2.msra.mxu0 0.0
    %196 = vmatprep.subr.mxu0 0.0
    %197 = vmatpush2.msra.mxu0 0.0
    %198 = vmatprep.subr.mxu0 0.0
    %199 = vmatpush2.msra.mxu0 0.0
    %200 = vmatprep.subr.mxu0 0.0
    %201 = vmatpush2.msra.mxu0 0.0
    %202 = vmatprep.subr.mxu0 0.0
    %203 = vmatpush2.msra.mxu0 0.0
    %204 = vmatprep.subr.mxu0 0.0
    %205 = vmatpush2.msra.mxu0 0.0
    %206 = vmatprep.subr.mxu0 0.0
    %207 = vmatpush2.msra.mxu0 0.0
    %208 = vmatprep.subr.mxu0 0.0
    %209 = vmatpush2.msra.mxu0 0.0
    %210 = vmatprep.subr.mxu0 0.0
    %211 = vmatpush2.msra.mxu0 0.0
    %212 = vmatprep.mubr.f32.mxu0 0.0
    %213 = vmatmul.mubr.f32.gmra.mxu0 %v146
    %v214 = vpop.f32.mrf.mxu0
    %v215 = vadd.f32 %v143, %v214
    %v216 = vpop.f32.mrf.mxu0
    %217 = vdwg.mxu0
    %v218 = vtanh.pop %v215
    %v219 = vld [vmem:[%s3] sm:$0xff]
    %v220 = vld [vmem:[%s3 + $0x8] sm:$0xff]
    %v221 = vld [vmem:[%s3 + $0x10] sm:$0xff]
    %v222 = vld [vmem:[%s3 + $0x18] sm:$0xff]
    %v223 = vld [vmem:[%s3 + $0x20] sm:$0xff]
    %v224 = vld [vmem:[%s3 + $0x28] sm:$0xff]
    %v225 = vld [vmem:[%s3 + $0x30] sm:$0xff]
    %v226 = vld [vmem:[%s3 + $0x38] sm:$0xff]
    %v227 = vlaneseq
    %v228 = vshrl.u32 %v227, 7
    %v229 = vsub.s32 2, %v228
    %v230 = vrot.slane %v48, %v229
    %v232 = vsel %vm144, %v218, 0
    %234 = vmatprep.subr.mxu0 0.0
    %235 = vmatpush1.msra.mxu0 0.0
    %236 = vmatprep.subr.mxu0 0.0
    %237 = vmatpush1.msra.mxu0 0.0
    %238 = vmatprep.subr.mxu0 0.0
    %239 = vmatpush1.msra.mxu0 0.0
    %240 = vmatprep.subr.mxu0 0.0
    %241 = vmatpush1.msra.mxu0 0.0
    %242 = vmatprep.subr.mxu0 0.0
    %243 = vmatpush1.msra.mxu0 0.0
    %244 = vmatprep.subr.mxu0 0.0
    %245 = vmatpush1.msra.mxu0 0.0
    %246 = vmatprep.subr.mxu0 0.0
    %247 = vmatpush1.msra.mxu0 0.0
    %248 = vmatprep.subr.mxu0 0.0
    %249 = vmatpush1.msra.mxu0 0.0
    %250 = vmatprep.subr.mxu0 0.0
    %251 = vmatpush1.msra.mxu0 %v226
    %252 = vmatprep.subr.mxu0 0.0
    %253 = vmatpush1.msra.mxu0 %v225
    %254 = vmatprep.subr.mxu0 0.0
    %255 = vmatpush1.msra.mxu0 %v224
    %256 = vmatprep.subr.mxu0 0.0
    %257 = vmatpush1.msra.mxu0 %v223
    %258 = vmatprep.subr.mxu0 0.0
    %259 = vmatpush1.msra.mxu0 %v222
    %260 = vmatprep.subr.mxu0 0.0
    %261 = vmatpush1.msra.mxu0 %v221
    %262 = vmatprep.subr.mxu0 0.0
    %263 = vmatpush1.msra.mxu0 %v220
    %264 = vmatprep.subr.mxu0 0.0
    %265 = vmatpush1.msra.mxu0 %v219
    %266 = vmatprep.subr.mxu0 0.0
    %267 = vmatpush2.msra.mxu0 0.0
    %268 = vmatprep.subr.mxu0 0.0
    %269 = vmatpush2.msra.mxu0 0.0
    %270 = vmatprep.subr.mxu0 0.0
    %271 = vmatpush2.msra.mxu0 0.0
    %272 = vmatprep.subr.mxu0 0.0
    %273 = vmatpush2.msra.mxu0 0.0
    %274 = vmatprep.subr.mxu0 0.0
    %275 = vmatpush2.msra.mxu0 0.0
    %276 = vmatprep.subr.mxu0 0.0
    %277 = vmatpush2.msra.mxu0 0.0
    %278 = vmatprep.subr.mxu0 0.0
    %279 = vmatpush2.msra.mxu0 0.0
    %280 = vmatprep.subr.mxu0 0.0
    %281 = vmatpush2.msra.mxu0 0.0
    %282 = vmatprep.subr.mxu0 0.0
    %283 = vmatpush2.msra.mxu0 0.0
    %284 = vmatprep.subr.mxu0 0.0
    %285 = vmatpush2.msra.mxu0 0.0
    %286 = vmatprep.subr.mxu0 0.0
    %287 = vmatpush2.msra.mxu0 0.0
    %288 = vmatprep.subr.mxu0 0.0
    %289 = vmatpush2.msra.mxu0 0.0
    %290 = vmatprep.subr.mxu0 0.0
    %291 = vmatpush2.msra.mxu0 0.0
    %292 = vmatprep.subr.mxu0 0.0
    %293 = vmatpush2.msra.mxu0 0.0
    %294 = vmatprep.subr.mxu0 0.0
    %295 = vmatpush2.msra.mxu0 0.0
    %296 = vmatprep.subr.mxu0 0.0
    %297 = vmatpush2.msra.mxu0 0.0
    %298 = vmatprep.mubr.f32.mxu0 0.0
    %299 = vmatmul.mubr.f32.gmra.mxu0 %v232
    %v300 = vpop.f32.mrf.mxu0
    %v301 = vadd.f32 %v230, %v300
    %v302 = vpop.f32.mrf.mxu0
    %303 = vdwg.mxu0
    %vm304 = vcmask 64512
    %305 = vst.msk [vmem:[#allocation7] sm:$0xff] %vm304, %v301
    // Predicated region
    $region30: #{actor_forward.1} parent=1 // pred_check
      _
    $region31: #{actor_forward.1} parent=1 // pred_check_branch
      %307 = sbr.rel (0) target = $region33
    $region32: #{actor_forward.1} parent=1 // pred_region
      %s309 = ssub.s32 128, 128
      %310 = vsyncadd [#allocation4], %s309
      %s312 = sshll.u32 [#allocation7], 4
      %s313 = int_to_ptr.vmem [resolvable:$true] %s312
      %315 = dma.vmem_to_hbm [thread:$0]  %s313, 128, %s5, [#allocation4]
    $region33: #{actor_forward.1} parent=1 // pred_fallthru
      _
    // Predicated region
    $region34: #{actor_forward.1} parent=1 // pred_check
      _
    $region35: #{actor_forward.1} parent=1 // pred_check_branch
      %317 = sbr.rel (0) target = $region37
    $region36: #{actor_forward.1} parent=1 // pred_region
      %318 = dma.done [#allocation4], 128
    $region37: #{actor_forward.1} parent=1 // pred_fallthru
      _
    %319 = vsyncpa [#allocation3], 1
    %320 = vsyncpa [#allocation6], 1
    %321 = vsyncpa [#allocation4], 1

</llo_original>
